<compile_context>
chip_gen: v6e
topology: v6e:2x2x1
jax: 0.10.0
libtpu: 0.0.40
codegen_flags: <defaults>
</compile_context>

<pallas_src>
import functools
import math

import jax
import jax.numpy as jnp
import numpy as np
from jax.experimental import pallas as pl
from jax.experimental.pallas import tpu as pltpu


# ----------------------------------------------------------------------------
# Fused Pallas kernel: all levels + whole batch in one invocation.
# ----------------------------------------------------------------------------
def _level_bce_kernel(bounds_ref, *rest, level_shapes, n_boxes, batch, n_levels):
    # bounds_ref:       VMEM i32 (B, L*N*4)  [x1, y1, width, height] per (level, box);
    #                   invalid boxes have width == height == 0.
    # rest[:-1]:        VMEM f32 (B, Hl*Wl)  flattened attention map per level.
    # rest[-1]:         VMEM f32 (B, 128)    per-batch loss (mean over levels), lane-broadcast.
    amap_refs = rest[:-1]
    out_ref = rest[-1]
    B = batch

    acc = jnp.zeros((B, 1), dtype=jnp.float32)

    for lid, (Hl, Wl) in enumerate(level_shapes):
        n = Hl * Wl
        p = amap_refs[lid][...]                                   # (B, n) f32

        # Flat pixel index -> (row, col), generated on the VPU (no HBM stream).
        idx = jax.lax.broadcasted_iota(jnp.int32, (B, n), 1)
        if (Wl & (Wl - 1)) == 0:                                  # power-of-two width
            shift = int(Wl).bit_length() - 1
            row = idx >> shift
            col = idx & (Wl - 1)
        else:
            row = idx // Wl
            col = idx - row * Wl

        mask = None
        for i in range(n_boxes):  # static unroll: n_boxes is compile-time
            base = (lid * n_boxes + i) * 4
            x1 = bounds_ref[:, base + 0:base + 1]                 # (B, 1) i32
            y1 = bounds_ref[:, base + 1:base + 2]
            bw = bounds_ref[:, base + 2:base + 3]                 # width  >= 0
            bh = bounds_ref[:, base + 3:base + 4]                 # height >= 0
            # Unsigned range compare: col in [x1, x1+bw)  (negative diff wraps huge).
            in_x = (col - x1).astype(jnp.uint32) < bw.astype(jnp.uint32)
            in_y = (row - y1).astype(jnp.uint32) < bh.astype(jnp.uint32)
            box = in_x & in_y
            mask = box if mask is None else (mask | box)

        # Select BEFORE the log: one transcendental per element instead of two.
        if mask is None:
            t = 1.0 - p
        else:
            t = jnp.where(mask, p, 1.0 - p)
        sel_log = jnp.maximum(jnp.log(t), -100.0)                 # torch BCE clamp
        # Negate folded into the accumulation.
        acc = acc - jnp.sum(sel_log, axis=1, keepdims=True) * (1.0 / float(n))

    out_ref[...] = jnp.broadcast_to(acc * (1.0 / float(n_levels)), (B, 128))


def _fused_level_bce(bounds, amap_flats, level_shapes, n_boxes):
    """Returns (B,) f32: per-batch mean-over-levels BCE."""
    B = bounds.shape[0]
    L = len(level_shapes)

    kernel = functools.partial(
        _level_bce_kernel,
        level_shapes=tuple(level_shapes), n_boxes=n_boxes, batch=B, n_levels=L)

    vmem_spec = pl.BlockSpec(memory_space=pltpu.MemorySpace.VMEM)
    out = pl.pallas_call(
        kernel,
        out_shape=jax.ShapeDtypeStruct((B, 128), jnp.float32),
        in_specs=[vmem_spec] * (1 + L),        # bounds + L attention maps, fully resident
        out_specs=vmem_spec,
        compiler_params=pltpu.CompilerParams(vmem_limit_bytes=32 * 1024 * 1024),
    )(bounds, *amap_flats)
    return out[:, 0]


# ----------------------------------------------------------------------------
# Wrapper reproducing LevelAttentionLoss.forward
# ----------------------------------------------------------------------------
def level_attention_loss(img_batch_shape, attention_maps, bboxs):
    """
    img_batch_shape: tuple of python ints (B, C, H, W)
    attention_maps:  list of arrays, each (B, 1, Hl, Wl), values in (0, 1)
    bboxs:           (B, N, 5) float32 -> [x1, y1, x2, y2, class]; class == -1 means pad
    Returns (1,) float32 loss.
    """
    h, w = img_batch_shape[2], img_batch_shape[3]
    B, N, _ = bboxs.shape
    L = len(attention_maps)

    x1 = bboxs[:, :, 0]
    y1 = bboxs[:, :, 1]
    x2 = bboxs[:, :, 2]
    y2 = bboxs[:, :, 3]
    cls = bboxs[:, :, 4]

    valid_base = (cls != -1) & (x1 <= w) & (y1 <= h) & (x2 <= w) & (y2 <= h)
    area = (x2 - x1) * (y2 - y1)
    has_valid = jnp.any(valid_base, axis=1)  # (B,)

    level_shapes = []
    amap_flats = []
    bounds_parts = []
    for lid, amap in enumerate(attention_maps):
        Hl, Wl = int(amap.shape[2]), int(amap.shape[3])
        level_shapes.append((Hl, Wl))
        amap_flats.append(amap[:, 0].reshape(B, Hl * Wl).astype(jnp.float32))

        # per-level area gating + scaling to integer pixel bounds (trunc / ceil+1)
        min_area = (2 ** (lid + 5)) ** 2 * 0.5
        max_area = (2 ** (lid + 5) * 1.58) ** 2 * 2
        lvl_valid = valid_base & (area >= min_area) & (area <= max_area)
        sx = Wl / w
        sy = Hl / h
        x1i = jnp.maximum(jnp.trunc(x1 * sx), 0.0).astype(jnp.int32)
        y1i = jnp.maximum(jnp.trunc(y1 * sy), 0.0).astype(jnp.int32)
        x2i = jnp.minimum(jnp.ceil(x2 * sx) + 1.0, Wl).astype(jnp.int32)
        y2i = jnp.minimum(jnp.ceil(y2 * sy) + 1.0, Hl).astype(jnp.int32)
        # widths clamped >= 0 (Python empty-slice semantics), invalid boxes -> empty
        bw = jnp.maximum(x2i - x1i, 0)
        bh = jnp.maximum(y2i - y1i, 0)
        zero = jnp.zeros_like(bw)
        bw = jnp.where(lvl_valid, bw, zero)
        bh = jnp.where(lvl_valid, bh, zero)
        bounds_parts.append(jnp.stack([x1i, y1i, bw, bh], axis=-1))  # (B, N, 4)

    bounds = jnp.stack(bounds_parts, axis=1).reshape(B, L * N * 4).astype(jnp.int32)

    per_batch = _fused_level_bce(bounds, amap_flats, tuple(level_shapes), N)

    # batches with zero valid boxes contribute exactly 0 (torch.tensor(0))
    per_batch = jnp.where(has_valid, per_batch, 0.0)
    return jnp.mean(per_batch, keepdims=True)  # shape (1,)


# ----------------------------------------------------------------------------
# Pure numpy reference mirroring the PyTorch code (for a correctness check)
# ----------------------------------------------------------------------------
def reference_loss(img_batch_shape, attention_maps, bboxs):
    h, w = img_batch_shape[2], img_batch_shape[3]
    B = bboxs.shape[0]
    batch_losses = []
    for j in range(B):
        ann = np.asarray(bboxs[j], dtype=np.float32)
        ann = ann[ann[:, 4] != -1]
        if ann.shape[0] == 0:
            batch_losses.append(0.0)
            continue
        cond = (ann[:, 0] <= w) & (ann[:, 1] <= h) & (ann[:, 2] <= w) & (ann[:, 3] <= h)
        ann = ann[cond]
        if ann.shape[0] == 0:
            batch_losses.append(0.0)
            continue
        area = (ann[:, 2] - ann[:, 0]) * (ann[:, 3] - ann[:, 1])
        lvl_losses = []
        for lid, am in enumerate(attention_maps):
            amap = np.asarray(am[j, 0], dtype=np.float32)
            min_a = (2 ** (lid + 5)) ** 2 * 0.5
            max_a = (2 ** (lid + 5) * 1.58) ** 2 * 2
            sel = (area >= min_a) & (area <= max_a)
            boxes = ann[sel].copy()
            Hl, Wl = amap.shape
            if boxes.shape[0]:
                boxes[:, 0] *= Wl / w
                boxes[:, 1] *= Hl / h
                boxes[:, 2] *= Wl / w
                boxes[:, 3] *= Hl / h
            gt = np.zeros(amap.shape, np.float32)
            for i in range(boxes.shape[0]):
                bx1 = max(int(boxes[i, 0]), 0)
                by1 = max(int(boxes[i, 1]), 0)
                bx2 = min(math.ceil(boxes[i, 2]) + 1, Wl)
                by2 = min(math.ceil(boxes[i, 3]) + 1, Hl)
                gt[by1:by2, bx1:bx2] = 1.0
            ln_p = np.maximum(np.log(amap), -100.0)
            ln_q = np.maximum(np.log(1.0 - amap), -100.0)
            bce = -(gt * ln_p + (1.0 - gt) * ln_q)
            lvl_losses.append(float(bce.mean()))
        batch_losses.append(float(np.mean(lvl_losses)))
    return np.mean(batch_losses)


if __name__ == "__main__":
    key = jax.random.PRNGKey(0)
    B = 3
    N = 4
    img_batch_shape = (B, 3, 512, 512)  # only H, W are used

    # Two pyramid levels of attention maps (sigmoid-ranged), NCHW like PyTorch.
    k0, k1 = jax.random.split(key)
    amap0 = jax.nn.sigmoid(jax.random.normal(k0, (B, 1, 16, 16), dtype=jnp.float32))
    amap1 = jax.nn.sigmoid(jax.random.normal(k1, (B, 1, 8, 8), dtype=jnp.float32))
    attention_maps = [amap0, amap1]

    # Deterministic boxes: [x1, y1, x2, y2, class]; class == -1 is padding.
    bboxs = jnp.array(
        [
            [  # batch 0
                [10.0, 10.0, 60.0, 60.0, 0.0],      # area 2500 -> levels 0 and 1
                [100.0, 100.0, 200.0, 220.0, 1.0],  # area 12000 -> level 1 only
                [0.0, 0.0, 600.0, 10.0, 2.0],       # x2 > W -> filtered by cond
                [0.0, 0.0, 0.0, 0.0, -1.0],         # padding
            ],
            [  # batch 1
                [20.0, 30.0, 50.0, 80.0, 0.0],      # area 1500 -> level 0 only
                [0.0, 0.0, 0.0, 0.0, -1.0],
                [0.0, 0.0, 0.0, 0.0, -1.0],
                [0.0, 0.0, 0.0, 0.0, -1.0],
            ],
            [  # batch 2: no valid boxes -> contributes exactly 0
                [0.0, 0.0, 0.0, 0.0, -1.0],
                [0.0, 0.0, 0.0, 0.0, -1.0],
                [0.0, 0.0, 0.0, 0.0, -1.0],
                [0.0, 0.0, 0.0, 0.0, -1.0],
            ],
        ],
        dtype=jnp.float32,
    )

    out = level_attention_loss(img_batch_shape, attention_maps, bboxs)
    out = jax.block_until_ready(out)

    ref = reference_loss(img_batch_shape, attention_maps, bboxs)
    assert out.shape == (1,), out.shape
    np.testing.assert_allclose(np.asarray(out)[0], ref, rtol=1e-4, atol=1e-5)

    print("KERNEL_OK")
</pallas_src>

<mosaic_0001>
module attributes {stable_mosaic.version = 11 : i64} {
  func.func @_level_bce_kernel(%arg0: memref<3x32xi32, #tpu.memory_space<vmem>>, %arg1: memref<3x256xf32, #tpu.memory_space<vmem>>, %arg2: memref<3x64xf32, #tpu.memory_space<vmem>>, %arg3: memref<3x128xf32, #tpu.memory_space<vmem>>) attributes {dimension_semantics = [], scalar_prefetch = 0 : i64, scratch_operands = 0 : i64, tpu.core_type = #tpu.core_type<tc>} {
    %cst = arith.constant 0.000000e+00 : f32
    %0 = vector.broadcast %cst : f32 to vector<3x1xf32>
    %c0 = arith.constant 0 : index
    %c0_0 = arith.constant 0 : index
    %1 = vector.load %arg1[%c0, %c0_0] : memref<3x256xf32, #tpu.memory_space<vmem>>, vector<3x256xf32>
    %2 = tpu.iota {dimensions = array<i32: 1>} : vector<3x256xi32>
    %c4_i32 = arith.constant 4 : i32
    %3 = vector.broadcast %c4_i32 : i32 to vector<3x256xi32>
    %4 = arith.shrsi %2, %3 : vector<3x256xi32>
    %c15_i32 = arith.constant 15 : i32
    %5 = vector.broadcast %c15_i32 : i32 to vector<3x256xi32>
    %6 = arith.andi %2, %5 : vector<3x256xi32>
    %c0_1 = arith.constant 0 : index
    %c0_2 = arith.constant 0 : index
    %7 = vector.load %arg0[%c0_1, %c0_2] : memref<3x32xi32, #tpu.memory_space<vmem>>, vector<3x1xi32>
    %c0_3 = arith.constant 0 : index
    %c1 = arith.constant 1 : index
    %8 = vector.load %arg0[%c0_3, %c1] : memref<3x32xi32, #tpu.memory_space<vmem>>, vector<3x1xi32>
    %c0_4 = arith.constant 0 : index
    %c2 = arith.constant 2 : index
    %9 = vector.load %arg0[%c0_4, %c2] : memref<3x32xi32, #tpu.memory_space<vmem>>, vector<3x1xi32>
    %c0_5 = arith.constant 0 : index
    %c3 = arith.constant 3 : index
    %10 = vector.load %arg0[%c0_5, %c3] : memref<3x32xi32, #tpu.memory_space<vmem>>, vector<3x1xi32>
    %11 = vector.broadcast %7 : vector<3x1xi32> to vector<3x256xi32>
    %12 = arith.subi %6, %11 : vector<3x256xi32>
    %13 = vector.broadcast %9 : vector<3x1xi32> to vector<3x256xi32>
    %14 = arith.cmpi ult, %12, %13 : vector<3x256xi32>
    %15 = vector.broadcast %8 : vector<3x1xi32> to vector<3x256xi32>
    %16 = arith.subi %4, %15 : vector<3x256xi32>
    %17 = vector.broadcast %10 : vector<3x1xi32> to vector<3x256xi32>
    %18 = arith.cmpi ult, %16, %17 : vector<3x256xi32>
    %19 = arith.andi %14, %18 : vector<3x256xi1>
    %c0_6 = arith.constant 0 : index
    %c4 = arith.constant 4 : index
    %20 = vector.load %arg0[%c0_6, %c4] : memref<3x32xi32, #tpu.memory_space<vmem>>, vector<3x1xi32>
    %c0_7 = arith.constant 0 : index
    %c5 = arith.constant 5 : index
    %21 = vector.load %arg0[%c0_7, %c5] : memref<3x32xi32, #tpu.memory_space<vmem>>, vector<3x1xi32>
    %c0_8 = arith.constant 0 : index
    %c6 = arith.constant 6 : index
    %22 = vector.load %arg0[%c0_8, %c6] : memref<3x32xi32, #tpu.memory_space<vmem>>, vector<3x1xi32>
    %c0_9 = arith.constant 0 : index
    %c7 = arith.constant 7 : index
    %23 = vector.load %arg0[%c0_9, %c7] : memref<3x32xi32, #tpu.memory_space<vmem>>, vector<3x1xi32>
    %24 = vector.broadcast %20 : vector<3x1xi32> to vector<3x256xi32>
    %25 = arith.subi %6, %24 : vector<3x256xi32>
    %26 = vector.broadcast %22 : vector<3x1xi32> to vector<3x256xi32>
    %27 = arith.cmpi ult, %25, %26 : vector<3x256xi32>
    %28 = vector.broadcast %21 : vector<3x1xi32> to vector<3x256xi32>
    %29 = arith.subi %4, %28 : vector<3x256xi32>
    %30 = vector.broadcast %23 : vector<3x1xi32> to vector<3x256xi32>
    %31 = arith.cmpi ult, %29, %30 : vector<3x256xi32>
    %32 = arith.andi %27, %31 : vector<3x256xi1>
    %33 = arith.ori %19, %32 : vector<3x256xi1>
    %c0_10 = arith.constant 0 : index
    %c8 = arith.constant 8 : index
    %34 = vector.load %arg0[%c0_10, %c8] : memref<3x32xi32, #tpu.memory_space<vmem>>, vector<3x1xi32>
    %c0_11 = arith.constant 0 : index
    %c9 = arith.constant 9 : index
    %35 = vector.load %arg0[%c0_11, %c9] : memref<3x32xi32, #tpu.memory_space<vmem>>, vector<3x1xi32>
    %c0_12 = arith.constant 0 : index
    %c10 = arith.constant 10 : index
    %36 = vector.load %arg0[%c0_12, %c10] : memref<3x32xi32, #tpu.memory_space<vmem>>, vector<3x1xi32>
    %c0_13 = arith.constant 0 : index
    %c11 = arith.constant 11 : index
    %37 = vector.load %arg0[%c0_13, %c11] : memref<3x32xi32, #tpu.memory_space<vmem>>, vector<3x1xi32>
    %38 = vector.broadcast %34 : vector<3x1xi32> to vector<3x256xi32>
    %39 = arith.subi %6, %38 : vector<3x256xi32>
    %40 = vector.broadcast %36 : vector<3x1xi32> to vector<3x256xi32>
    %41 = arith.cmpi ult, %39, %40 : vector<3x256xi32>
    %42 = vector.broadcast %35 : vector<3x1xi32> to vector<3x256xi32>
    %43 = arith.subi %4, %42 : vector<3x256xi32>
    %44 = vector.broadcast %37 : vector<3x1xi32> to vector<3x256xi32>
    %45 = arith.cmpi ult, %43, %44 : vector<3x256xi32>
    %46 = arith.andi %41, %45 : vector<3x256xi1>
    %47 = arith.ori %33, %46 : vector<3x256xi1>
    %c0_14 = arith.constant 0 : index
    %c12 = arith.constant 12 : index
    %48 = vector.load %arg0[%c0_14, %c12] : memref<3x32xi32, #tpu.memory_space<vmem>>, vector<3x1xi32>
    %c0_15 = arith.constant 0 : index
    %c13 = arith.constant 13 : index
    %49 = vector.load %arg0[%c0_15, %c13] : memref<3x32xi32, #tpu.memory_space<vmem>>, vector<3x1xi32>
    %c0_16 = arith.constant 0 : index
    %c14 = arith.constant 14 : index
    %50 = vector.load %arg0[%c0_16, %c14] : memref<3x32xi32, #tpu.memory_space<vmem>>, vector<3x1xi32>
    %c0_17 = arith.constant 0 : index
    %c15 = arith.constant 15 : index
    %51 = vector.load %arg0[%c0_17, %c15] : memref<3x32xi32, #tpu.memory_space<vmem>>, vector<3x1xi32>
    %52 = vector.broadcast %48 : vector<3x1xi32> to vector<3x256xi32>
    %53 = arith.subi %6, %52 : vector<3x256xi32>
    %54 = vector.broadcast %50 : vector<3x1xi32> to vector<3x256xi32>
    %55 = arith.cmpi ult, %53, %54 : vector<3x256xi32>
    %56 = vector.broadcast %49 : vector<3x1xi32> to vector<3x256xi32>
    %57 = arith.subi %4, %56 : vector<3x256xi32>
    %58 = vector.broadcast %51 : vector<3x1xi32> to vector<3x256xi32>
    %59 = arith.cmpi ult, %57, %58 : vector<3x256xi32>
    %60 = arith.andi %55, %59 : vector<3x256xi1>
    %61 = arith.ori %47, %60 : vector<3x256xi1>
    %cst_18 = arith.constant 1.000000e+00 : f32
    %62 = vector.broadcast %cst_18 : f32 to vector<3x256xf32>
    %63 = arith.subf %62, %1 : vector<3x256xf32>
    %64 = arith.select %61, %1, %63 : vector<3x256xi1>, vector<3x256xf32>
    %65 = math.log %64 : vector<3x256xf32>
    %cst_19 = arith.constant -1.000000e+02 : f32
    %66 = vector.broadcast %cst_19 : f32 to vector<3x256xf32>
    %67 = arith.maximumf %65, %66 : vector<3x256xf32>
    %cst_20 = arith.constant dense<0.000000e+00> : vector<3xf32>
    %68 = vector.multi_reduction <add>, %67, %cst_20 [1] : vector<3x256xf32> to vector<3xf32>
    %69 = vector.shape_cast %68 : vector<3xf32> to vector<3x1xf32>
    %cst_21 = arith.constant 3.906250e-03 : f32
    %70 = vector.broadcast %cst_21 : f32 to vector<3x1xf32>
    %71 = arith.mulf %69, %70 : vector<3x1xf32>
    %72 = arith.subf %0, %71 : vector<3x1xf32>
    %c0_22 = arith.constant 0 : index
    %c0_23 = arith.constant 0 : index
    %73 = vector.load %arg2[%c0_22, %c0_23] : memref<3x64xf32, #tpu.memory_space<vmem>>, vector<3x64xf32>
    %74 = tpu.iota {dimensions = array<i32: 1>} : vector<3x64xi32>
    %c3_i32 = arith.constant 3 : i32
    %75 = vector.broadcast %c3_i32 : i32 to vector<3x64xi32>
    %76 = arith.shrsi %74, %75 : vector<3x64xi32>
    %c7_i32 = arith.constant 7 : i32
    %77 = vector.broadcast %c7_i32 : i32 to vector<3x64xi32>
    %78 = arith.andi %74, %77 : vector<3x64xi32>
    %c0_24 = arith.constant 0 : index
    %c16 = arith.constant 16 : index
    %79 = vector.load %arg0[%c0_24, %c16] : memref<3x32xi32, #tpu.memory_space<vmem>>, vector<3x1xi32>
    %c0_25 = arith.constant 0 : index
    %c17 = arith.constant 17 : index
    %80 = vector.load %arg0[%c0_25, %c17] : memref<3x32xi32, #tpu.memory_space<vmem>>, vector<3x1xi32>
    %c0_26 = arith.constant 0 : index
    %c18 = arith.constant 18 : index
    %81 = vector.load %arg0[%c0_26, %c18] : memref<3x32xi32, #tpu.memory_space<vmem>>, vector<3x1xi32>
    %c0_27 = arith.constant 0 : index
    %c19 = arith.constant 19 : index
    %82 = vector.load %arg0[%c0_27, %c19] : memref<3x32xi32, #tpu.memory_space<vmem>>, vector<3x1xi32>
    %83 = vector.broadcast %79 : vector<3x1xi32> to vector<3x64xi32>
    %84 = arith.subi %78, %83 : vector<3x64xi32>
    %85 = vector.broadcast %81 : vector<3x1xi32> to vector<3x64xi32>
    %86 = arith.cmpi ult, %84, %85 : vector<3x64xi32>
    %87 = vector.broadcast %80 : vector<3x1xi32> to vector<3x64xi32>
    %88 = arith.subi %76, %87 : vector<3x64xi32>
    %89 = vector.broadcast %82 : vector<3x1xi32> to vector<3x64xi32>
    %90 = arith.cmpi ult, %88, %89 : vector<3x64xi32>
    %91 = arith.andi %86, %90 : vector<3x64xi1>
    %c0_28 = arith.constant 0 : index
    %c20 = arith.constant 20 : index
    %92 = vector.load %arg0[%c0_28, %c20] : memref<3x32xi32, #tpu.memory_space<vmem>>, vector<3x1xi32>
    %c0_29 = arith.constant 0 : index
    %c21 = arith.constant 21 : index
    %93 = vector.load %arg0[%c0_29, %c21] : memref<3x32xi32, #tpu.memory_space<vmem>>, vector<3x1xi32>
    %c0_30 = arith.constant 0 : index
    %c22 = arith.constant 22 : index
    %94 = vector.load %arg0[%c0_30, %c22] : memref<3x32xi32, #tpu.memory_space<vmem>>, vector<3x1xi32>
    %c0_31 = arith.constant 0 : index
    %c23 = arith.constant 23 : index
    %95 = vector.load %arg0[%c0_31, %c23] : memref<3x32xi32, #tpu.memory_space<vmem>>, vector<3x1xi32>
    %96 = vector.broadcast %92 : vector<3x1xi32> to vector<3x64xi32>
    %97 = arith.subi %78, %96 : vector<3x64xi32>
    %98 = vector.broadcast %94 : vector<3x1xi32> to vector<3x64xi32>
    %99 = arith.cmpi ult, %97, %98 : vector<3x64xi32>
    %100 = vector.broadcast %93 : vector<3x1xi32> to vector<3x64xi32>
    %101 = arith.subi %76, %100 : vector<3x64xi32>
    %102 = vector.broadcast %95 : vector<3x1xi32> to vector<3x64xi32>
    %103 = arith.cmpi ult, %101, %102 : vector<3x64xi32>
    %104 = arith.andi %99, %103 : vector<3x64xi1>
    %105 = arith.ori %91, %104 : vector<3x64xi1>
    %c0_32 = arith.constant 0 : index
    %c24 = arith.constant 24 : index
    %106 = vector.load %arg0[%c0_32, %c24] : memref<3x32xi32, #tpu.memory_space<vmem>>, vector<3x1xi32>
    %c0_33 = arith.constant 0 : index
    %c25 = arith.constant 25 : index
    %107 = vector.load %arg0[%c0_33, %c25] : memref<3x32xi32, #tpu.memory_space<vmem>>, vector<3x1xi32>
    %c0_34 = arith.constant 0 : index
    %c26 = arith.constant 26 : index
    %108 = vector.load %arg0[%c0_34, %c26] : memref<3x32xi32, #tpu.memory_space<vmem>>, vector<3x1xi32>
    %c0_35 = arith.constant 0 : index
    %c27 = arith.constant 27 : index
    %109 = vector.load %arg0[%c0_35, %c27] : memref<3x32xi32, #tpu.memory_space<vmem>>, vector<3x1xi32>
    %110 = vector.broadcast %106 : vector<3x1xi32> to vector<3x64xi32>
    %111 = arith.subi %78, %110 : vector<3x64xi32>
    %112 = vector.broadcast %108 : vector<3x1xi32> to vector<3x64xi32>
    %113 = arith.cmpi ult, %111, %112 : vector<3x64xi32>
    %114 = vector.broadcast %107 : vector<3x1xi32> to vector<3x64xi32>
    %115 = arith.subi %76, %114 : vector<3x64xi32>
    %116 = vector.broadcast %109 : vector<3x1xi32> to vector<3x64xi32>
    %117 = arith.cmpi ult, %115, %116 : vector<3x64xi32>
    %118 = arith.andi %113, %117 : vector<3x64xi1>
    %119 = arith.ori %105, %118 : vector<3x64xi1>
    %c0_36 = arith.constant 0 : index
    %c28 = arith.constant 28 : index
    %120 = vector.load %arg0[%c0_36, %c28] : memref<3x32xi32, #tpu.memory_space<vmem>>, vector<3x1xi32>
    %c0_37 = arith.constant 0 : index
    %c29 = arith.constant 29 : index
    %121 = vector.load %arg0[%c0_37, %c29] : memref<3x32xi32, #tpu.memory_space<vmem>>, vector<3x1xi32>
    %c0_38 = arith.constant 0 : index
    %c30 = arith.constant 30 : index
    %122 = vector.load %arg0[%c0_38, %c30] : memref<3x32xi32, #tpu.memory_space<vmem>>, vector<3x1xi32>
    %c0_39 = arith.constant 0 : index
    %c31 = arith.constant 31 : index
    %123 = vector.load %arg0[%c0_39, %c31] : memref<3x32xi32, #tpu.memory_space<vmem>>, vector<3x1xi32>
    %124 = vector.broadcast %120 : vector<3x1xi32> to vector<3x64xi32>
    %125 = arith.subi %78, %124 : vector<3x64xi32>
    %126 = vector.broadcast %122 : vector<3x1xi32> to vector<3x64xi32>
    %127 = arith.cmpi ult, %125, %126 : vector<3x64xi32>
    %128 = vector.broadcast %121 : vector<3x1xi32> to vector<3x64xi32>
    %129 = arith.subi %76, %128 : vector<3x64xi32>
    %130 = vector.broadcast %123 : vector<3x1xi32> to vector<3x64xi32>
    %131 = arith.cmpi ult, %129, %130 : vector<3x64xi32>
    %132 = arith.andi %127, %131 : vector<3x64xi1>
    %133 = arith.ori %119, %132 : vector<3x64xi1>
    %cst_40 = arith.constant 1.000000e+00 : f32
    %134 = vector.broadcast %cst_40 : f32 to vector<3x64xf32>
    %135 = arith.subf %134, %73 : vector<3x64xf32>
    %136 = arith.select %133, %73, %135 : vector<3x64xi1>, vector<3x64xf32>
    %137 = math.log %136 : vector<3x64xf32>
    %cst_41 = arith.constant -1.000000e+02 : f32
    %138 = vector.broadcast %cst_41 : f32 to vector<3x64xf32>
    %139 = arith.maximumf %137, %138 : vector<3x64xf32>
    %cst_42 = arith.constant dense<0.000000e+00> : vector<3xf32>
    %140 = vector.multi_reduction <add>, %139, %cst_42 [1] : vector<3x64xf32> to vector<3xf32>
    %141 = vector.shape_cast %140 : vector<3xf32> to vector<3x1xf32>
    %cst_43 = arith.constant 1.562500e-02 : f32
    %142 = vector.broadcast %cst_43 : f32 to vector<3x1xf32>
    %143 = arith.mulf %141, %142 : vector<3x1xf32>
    %144 = arith.subf %72, %143 : vector<3x1xf32>
    %cst_44 = arith.constant 5.000000e-01 : f32
    %145 = vector.broadcast %cst_44 : f32 to vector<3x1xf32>
    %146 = arith.mulf %144, %145 : vector<3x1xf32>
    %147 = vector.shape_cast %146 : vector<3x1xf32> to vector<3x1xf32>
    %148 = vector.broadcast %147 : vector<3x1xf32> to vector<3x128xf32>
    %c0_45 = arith.constant 0 : index
    %c0_46 = arith.constant 0 : index
    %149 = vector.load %arg3[%c0_45, %c0_46] : memref<3x128xf32, #tpu.memory_space<vmem>>, vector<3x128xf32>
    tpu.vector_store %arg3[%c0_45, %c0_46], %148 {strides = array<i32>} : memref<3x128xf32, #tpu.memory_space<vmem>>, vector<3x128xf32>,
    return
  }
}

</mosaic_0001>

<llo_original>
// kernel: tpu_custom_call.1
$region0: #{tpu_custom_call.1}
  #allocation0 [shape = 'u32[]', space=smem, size = 0x4, offset = 0x4, fixed_abs, tag = 'smem constant byte address 0x4 - core index']
  #allocation1 [shape = 'u32[144,128]{1,0:T(1,128)}', space=vmem, size = 0x12000, scoped, tag = 'internal scratch']
  %s0 = inlined_call_operand.hbm [shape: s32[3,32], index: 0, kind: input, shape index: {}]
  %s1 = inlined_call_operand.hbm [shape: f32[3,256], index: 1, kind: input, shape index: {}]
  %s2 = inlined_call_operand.hbm [shape: f32[3,64], index: 2, kind: input, shape index: {}]
  %s3 = inlined_call_operand.hbm [shape: f32[3,128], index: 3, kind: output, shape index: {}]
  %s4 = sld [smem:[#allocation0]]
  $region34: #{tpu_custom_call.1} parent=0
    _
  %s6 = ssub.s32 1, %s4
  %s7 = scalar_select 0, %s6, %s4
  $region1: #{tpu_custom_call.1} parent=0
    #allocation2 [shape = 'u8[2048]{0}', space=vmem, size = 0x800, scoped, tag = 'input window, operand 0, single buffered']
    #allocation3 [shape = 's32[1]{0}', space=sflag, size = 0x4, scoped, tag = 'scoped memory for tpu_custom_call.1']
    #allocation4 [shape = 's32[1]{0}', space=sflag, size = 0x4, scoped, tag = 'scoped memory for tpu_custom_call.1']
    #allocation5 [shape = 'u8[4096]{0}', space=vmem, size = 0x1000, scoped, tag = 'input window, operand 1, single buffered']
    #allocation6 [shape = 's32[1]{0}', space=sflag, size = 0x4, scoped, tag = 'scoped memory for tpu_custom_call.1']
    #allocation7 [shape = 'u8[2048]{0}', space=vmem, size = 0x800, scoped, tag = 'input window, operand 2, single buffered']
    #allocation8 [shape = 'u8[2048]{0}', space=vmem, size = 0x800, scoped, tag = 'output window, operand 0, single buffered']
    %8 = vsyncpa [#allocation3], 0
    %9 = vsyncpa [#allocation6], 0
    %10 = vsyncpa [#allocation4], 0
    // Predicated region
    $region2: #{tpu_custom_call.1} parent=1 // pred_check
      _
    $region3: #{tpu_custom_call.1} parent=1 // pred_check_branch
      %12 = sbr.rel (0) target = $region5
    $region4: #{tpu_custom_call.1} parent=1 // pred_region
      %s14 = ssub.s32 64, 64
      %15 = vsyncadd [#allocation3], %s14
      %s17 = sshll.u32 [#allocation2], 4
      %s18 = int_to_ptr.vmem [resolvable:$true] %s17
      %20 = dma.hbm_to_vmem [thread:$0]  %s0, 64, %s18, [#allocation3]
    $region5: #{tpu_custom_call.1} parent=1 // pred_fallthru
      _
    // Predicated region
    $region6: #{tpu_custom_call.1} parent=1 // pred_check
      _
    $region7: #{tpu_custom_call.1} parent=1 // pred_check_branch
      %22 = sbr.rel (0) target = $region9
    $region8: #{tpu_custom_call.1} parent=1 // pred_region
      %s24 = ssub.s32 128, 128
      %25 = vsyncadd [#allocation6], %s24
      %s27 = sshll.u32 [#allocation5], 4
      %s28 = int_to_ptr.vmem [resolvable:$true] %s27
      %30 = dma.hbm_to_vmem [thread:$0]  %s1, 128, %s28, [#allocation6]
    $region9: #{tpu_custom_call.1} parent=1 // pred_fallthru
      _
    // Predicated region
    $region10: #{tpu_custom_call.1} parent=1 // pred_check
      _
    $region11: #{tpu_custom_call.1} parent=1 // pred_check_branch
      %32 = sbr.rel (0) target = $region13
    $region12: #{tpu_custom_call.1} parent=1 // pred_region
      %s34 = ssub.s32 64, 64
      %35 = vsyncadd [#allocation6], %s34
      %s37 = sshll.u32 [#allocation7], 4
      %s38 = int_to_ptr.vmem [resolvable:$true] %s37
      %40 = dma.hbm_to_vmem [thread:$0]  %s2, 64, %s38, [#allocation6]
    $region13: #{tpu_custom_call.1} parent=1 // pred_fallthru
      _
    // Predicated region
    $region14: #{tpu_custom_call.1} parent=1 // pred_check
      _
    $region15: #{tpu_custom_call.1} parent=1 // pred_check_branch
      %42 = sbr.rel (0) target = $region17
    $region16: #{tpu_custom_call.1} parent=1 // pred_region
      %43 = dma.done [#allocation3], 64
    $region17: #{tpu_custom_call.1} parent=1 // pred_fallthru
      _
    // Predicated region
    $region18: #{tpu_custom_call.1} parent=1 // pred_check
      _
    $region19: #{tpu_custom_call.1} parent=1 // pred_check_branch
      %45 = sbr.rel (0) target = $region21
    $region20: #{tpu_custom_call.1} parent=1 // pred_region
      %46 = dma.done [#allocation6], 128
    $region21: #{tpu_custom_call.1} parent=1 // pred_fallthru
      _
    // Predicated region
    $region22: #{tpu_custom_call.1} parent=1 // pred_check
      _
    $region23: #{tpu_custom_call.1} parent=1 // pred_check_branch
      %48 = sbr.rel (0) target = $region25
    $region24: #{tpu_custom_call.1} parent=1 // pred_region
      %49 = dma.done [#allocation6], 64
    $region25: #{tpu_custom_call.1} parent=1 // pred_fallthru
      _
    %v50 = vld [vmem:[#allocation5] sm:$0x77]
    %v51 = vlaneseq
    %v52 = vand.u32 %v51, 127
    %v53 = vadd.s32 %v52, 128
    %v54 = vshra.s32 %v52, 4
    %v55 = vshra.s32 %v53, 4
    %v56 = vand.u32 %v52, 15
    %v57 = vand.u32 %v53, 15
    %v58 = vld [vmem:[#allocation2] sm:$0x7]
    %59 = vset.pattern.permute.xlu0 0
    %60 = vperm.xlu0 %59, %v58
    %v61 = vpop.permute.xlu0 %60
    %v62 = vsub.s32 %v56, %v61
    %v63 = vsub.s32 %v57, %v61
    %64 = vset.pattern.permute.xlu0 2
    %65 = vperm.xlu0 %64, %v58
    %v66 = vpop.permute.xlu0 %65
    %vm67 = vcmp.lt.u32.totalorder %v62, %v66
    %vm68 = vcmp.lt.u32.totalorder %v63, %v66
    %69 = vset.pattern.permute.xlu0 1
    %70 = vperm.xlu0 %69, %v58
    %v71 = vpop.permute.xlu0 %70
    %v72 = vsub.s32 %v54, %v71
    %v73 = vsub.s32 %v55, %v71
    %74 = vset.pattern.permute.xlu0 3
    %75 = vperm.xlu0 %74, %v58
    %v76 = vpop.permute.xlu0 %75
    %vm77 = vcmp.lt.u32.totalorder %v72, %v76
    %vm78 = vcmp.lt.u32.totalorder %v73, %v76
    %vm79 = vmand %vm67, %vm77
    %vm80 = vmand %vm68, %vm78
    %81 = vset.pattern.permute.xlu0 4
    %82 = vperm.xlu0 %81, %v58
    %v83 = vpop.permute.xlu0 %82
    %v84 = vsub.s32 %v56, %v83
    %v85 = vsub.s32 %v57, %v83
    %86 = vset.pattern.permute.xlu0 6
    %87 = vperm.xlu0 %86, %v58
    %v88 = vpop.permute.xlu0 %87
    %vm89 = vcmp.lt.u32.totalorder %v84, %v88
    %vm90 = vcmp.lt.u32.totalorder %v85, %v88
    %91 = vset.pattern.permute.xlu0 5
    %92 = vperm.xlu0 %91, %v58
    %v93 = vpop.permute.xlu0 %92
    %v94 = vsub.s32 %v54, %v93
    %v95 = vsub.s32 %v55, %v93
    %96 = vset.pattern.permute.xlu0 7
    %97 = vperm.xlu0 %96, %v58
    %v98 = vpop.permute.xlu0 %97
    %vm99 = vcmp.lt.u32.totalorder %v94, %v98
    %vm100 = vcmp.lt.u32.totalorder %v95, %v98
    %vm101 = vmand %vm89, %vm99
    %vm102 = vmand %vm90, %vm100
    %vm103 = vmor %vm79, %vm101
    %vm104 = vmor %vm80, %vm102
    %105 = vset.pattern.permute.xlu0 8
    %106 = vperm.xlu0 %105, %v58
    %v107 = vpop.permute.xlu0 %106
    %v108 = vsub.s32 %v56, %v107
    %v109 = vsub.s32 %v57, %v107
    %110 = vset.pattern.permute.xlu0 10
    %111 = vperm.xlu0 %110, %v58
    %v112 = vpop.permute.xlu0 %111
    %vm113 = vcmp.lt.u32.totalorder %v108, %v112
    %vm114 = vcmp.lt.u32.totalorder %v109, %v112
    %115 = vset.pattern.permute.xlu0 9
    %116 = vperm.xlu0 %115, %v58
    %v117 = vpop.permute.xlu0 %116
    %v118 = vsub.s32 %v54, %v117
    %v119 = vsub.s32 %v55, %v117
    %120 = vset.pattern.permute.xlu0 11
    %121 = vperm.xlu0 %120, %v58
    %v122 = vpop.permute.xlu0 %121
    %vm123 = vcmp.lt.u32.totalorder %v118, %v122
    %vm124 = vcmp.lt.u32.totalorder %v119, %v122
    %vm125 = vmand %vm113, %vm123
    %vm126 = vmand %vm114, %vm124
    %vm127 = vmor %vm103, %vm125
    %vm128 = vmor %vm104, %vm126
    %129 = vset.pattern.permute.xlu0 12
    %130 = vperm.xlu0 %129, %v58
    %v131 = vpop.permute.xlu0 %130
    %v132 = vsub.s32 %v56, %v131
    %v133 = vsub.s32 %v57, %v131
    %134 = vset.pattern.permute.xlu0 14
    %135 = vperm.xlu0 %134, %v58
    %v136 = vpop.permute.xlu0 %135
    %vm137 = vcmp.lt.u32.totalorder %v132, %v136
    %vm138 = vcmp.lt.u32.totalorder %v133, %v136
    %139 = vset.pattern.permute.xlu0 13
    %140 = vperm.xlu0 %139, %v58
    %v141 = vpop.permute.xlu0 %140
    %v142 = vsub.s32 %v54, %v141
    %v143 = vsub.s32 %v55, %v141
    %144 = vset.pattern.permute.xlu0 15
    %145 = vperm.xlu0 %144, %v58
    %v146 = vpop.permute.xlu0 %145
    %vm147 = vcmp.lt.u32.totalorder %v142, %v146
    %vm148 = vcmp.lt.u32.totalorder %v143, %v146
    %vm149 = vmand %vm137, %vm147
    %vm150 = vmand %vm138, %vm148
    %vm151 = vmor %vm127, %vm149
    %vm152 = vmor %vm128, %vm150
    %v153 = vsub.f32 1.0, %v50
    %v155 = vcombine.high %v50, %v50
    %v158 = vcombine.high %v153, %v153
    %v160 = vsel %vm151, %v50, %v153
    %v161 = vsel %vm152, %v155, %v158
    %v162 = vlog2.pop %v160
    %v163 = vmul.f32 %v162, 0.6931472
    %v164 = vlog2.pop %v161
    %v165 = vmul.f32 %v164, 0.6931472
    %v166 = vmax.f32 %v163, -100.0
    %v167 = vmax.f32 %v165, -100.0
    %vm168 = vcmask 1042432
    %v169 = vsel %vm168, %v166, 0.0
    %v170 = vsel %vm168, %v167, 0.0
    %v171 = vadd.f32 %v169, %v170
    %172 = vadd.xlane.f32.xlu0 %v171
    %v173 = vpop.xlane.xlu0 %172
    %v174 = vmul.f32 %v173, 0.00390625
    %v175 = vsub.f32 0.0, %v174
    %v176 = vld [vmem:[#allocation7] sm:$0x7]
    %v177 = vshra.s32 %v52, 3
    %v178 = vand.u32 %v52, 7
    %v179 = vld [vmem:[#allocation2] sm:$0x7]
    %180 = vset.pattern.permute.xlu0 16
    %181 = vperm.xlu0 %180, %v179
    %v182 = vpop.permute.xlu0 %181
    %v183 = vsub.s32 %v178, %v182
    %184 = vset.pattern.permute.xlu0 18
    %185 = vperm.xlu0 %184, %v179
    %v186 = vpop.permute.xlu0 %185
    %vm187 = vcmp.lt.u32.totalorder %v183, %v186
    %188 = vset.pattern.permute.xlu0 17
    %189 = vperm.xlu0 %188, %v179
    %v190 = vpop.permute.xlu0 %189
    %v191 = vsub.s32 %v177, %v190
    %192 = vset.pattern.permute.xlu0 19
    %193 = vperm.xlu0 %192, %v179
    %v194 = vpop.permute.xlu0 %193
    %vm195 = vcmp.lt.u32.totalorder %v191, %v194
    %vm196 = vmand %vm187, %vm195
    %197 = vset.pattern.permute.xlu0 20
    %198 = vperm.xlu0 %197, %v179
    %v199 = vpop.permute.xlu0 %198
    %v200 = vsub.s32 %v178, %v199
    %201 = vset.pattern.permute.xlu0 22
    %202 = vperm.xlu0 %201, %v179
    %v203 = vpop.permute.xlu0 %202
    %vm204 = vcmp.lt.u32.totalorder %v200, %v203
    %205 = vset.pattern.permute.xlu0 21
    %206 = vperm.xlu0 %205, %v179
    %v207 = vpop.permute.xlu0 %206
    %v208 = vsub.s32 %v177, %v207
    %209 = vset.pattern.permute.xlu0 23
    %210 = vperm.xlu0 %209, %v179
    %v211 = vpop.permute.xlu0 %210
    %vm212 = vcmp.lt.u32.totalorder %v208, %v211
    %vm213 = vmand %vm204, %vm212
    %vm214 = vmor %vm196, %vm213
    %215 = vset.pattern.permute.xlu0 24
    %216 = vperm.xlu0 %215, %v179
    %v217 = vpop.permute.xlu0 %216
    %v218 = vsub.s32 %v178, %v217
    %219 = vset.pattern.permute.xlu0 26
    %220 = vperm.xlu0 %219, %v179
    %v221 = vpop.permute.xlu0 %220
    %vm222 = vcmp.lt.u32.totalorder %v218, %v221
    %223 = vset.pattern.permute.xlu0 25
    %224 = vperm.xlu0 %223, %v179
    %v225 = vpop.permute.xlu0 %224
    %v226 = vsub.s32 %v177, %v225
    %227 = vset.pattern.permute.xlu0 27
    %228 = vperm.xlu0 %227, %v179
    %v229 = vpop.permute.xlu0 %228
    %vm230 = vcmp.lt.u32.totalorder %v226, %v229
    %vm231 = vmand %vm222, %vm230
    %vm232 = vmor %vm214, %vm231
    %233 = vset.pattern.permute.xlu0 28
    %234 = vperm.xlu0 %233, %v179
    %v235 = vpop.permute.xlu0 %234
    %v236 = vsub.s32 %v178, %v235
    %237 = vset.pattern.permute.xlu0 30
    %238 = vperm.xlu0 %237, %v179
    %v239 = vpop.permute.xlu0 %238
    %vm240 = vcmp.lt.u32.totalorder %v236, %v239
    %241 = vset.pattern.permute.xlu0 29
    %242 = vperm.xlu0 %241, %v179
    %v243 = vpop.permute.xlu0 %242
    %v244 = vsub.s32 %v177, %v243
    %245 = vset.pattern.permute.xlu0 31
    %246 = vperm.xlu0 %245, %v179
    %v247 = vpop.permute.xlu0 %246
    %vm248 = vcmp.lt.u32.totalorder %v244, %v247
    %vm249 = vmand %vm240, %vm248
    %vm250 = vmor %vm232, %vm249
    %v251 = vsub.f32 1.0, %v176
    %v252 = vsel %vm250, %v176, %v251
    %v253 = vlog2.pop %v252
    %v254 = vmul.f32 %v253, 0.6931472
    %v255 = vmax.f32 %v254, -100.0
    %vm256 = vcmask 518144
    %v257 = vsel %vm256, %v255, 0.0
    %258 = vadd.xlane.f32.xlu0 %v257
    %v259 = vpop.xlane.xlu0 %258
    %v260 = vmul.f32 %v259, 0.015625
    %v261 = vsub.f32 %v175, %v260
    %v262 = vmul.f32 %v261, 0.5
    %263 = vst [vmem:[#allocation8] sm:$0x7] %v262
    // Predicated region
    $region26: #{tpu_custom_call.1} parent=1 // pred_check
      _
    $region27: #{tpu_custom_call.1} parent=1 // pred_check_branch
      %265 = sbr.rel (0) target = $region29
    $region28: #{tpu_custom_call.1} parent=1 // pred_region
      %s267 = ssub.s32 64, 64
      %268 = vsyncadd [#allocation4], %s267
      %s270 = sshll.u32 [#allocation8], 4
      %s271 = int_to_ptr.vmem [resolvable:$true] %s270
      %273 = dma.vmem_to_hbm [thread:$0]  %s271, 64, %s3, [#allocation4]
    $region29: #{tpu_custom_call.1} parent=1 // pred_fallthru
      _
    // Predicated region
    $region30: #{tpu_custom_call.1} parent=1 // pred_check
      _
    $region31: #{tpu_custom_call.1} parent=1 // pred_check_branch
      %275 = sbr.rel (0) target = $region33
    $region32: #{tpu_custom_call.1} parent=1 // pred_region
      %276 = dma.done [#allocation4], 64
    $region33: #{tpu_custom_call.1} parent=1 // pred_fallthru
      _
    %277 = vsyncpa [#allocation3], 1
    %278 = vsyncpa [#allocation6], 1
    %279 = vsyncpa [#allocation4], 1

</llo_original>
